<compile_context>
chip_gen: v6e
topology: v6e:2x2x1
jax: 0.10.0
libtpu: 0.0.40
codegen_flags: <defaults>
</compile_context>

<pallas_src>
import jax
import jax.numpy as jnp
from jax import lax
from jax.experimental import pallas as pl
from jax.experimental.pallas import tpu as pltpu


def _round_up(x, m):
    return (x + m - 1) // m * m


def _round_down(x, m):
    return x // m * m


def _chip_info():
    """Returns (physical_vmem_bytes, dual_tensorcore?) with a conservative fallback."""
    try:
        info = pltpu.get_tpu_info()
        phys_vmem = int(getattr(info, "vmem_capacity_bytes", 64 << 20))
    except Exception:
        phys_vmem = 64 << 20
    # v7x has 64 MiB VMEM per TensorCore and 2 TCs/chip; v5e/v6e have 128 MiB and 1 TC.
    dual_tc = phys_vmem <= (64 << 20)
    return phys_vmem, dual_tc


def _make_ce_kernel(n_valid, tile_n, tiles_per_part, needs_mask):
    def kernel(logits_ref, labels_ref, out_ref):
        p = pl.program_id(0)   # megacore / partial-sum axis ("parallel")
        i = pl.program_id(1)   # batch-tile reduction axis ("arbitrary")

        @pl.when(i == 0)
        def _init():
            out_ref[...] = jnp.zeros_like(out_ref)

        logits = logits_ref[...].astype(jnp.float32)       # cast on-vreg after DMA, (T, C)
        labels = labels_ref[...]                           # (T, 1) int32
        t, c = logits.shape

        # Numerically-stable per-row logsumexp; row_max cancels out of the final NLL.
        row_max = jnp.max(logits, axis=-1, keepdims=True)                        # (T, 1)
        shifted = logits - row_max
        lse = jnp.log(jnp.sum(jnp.exp(shifted), axis=-1, keepdims=True))         # (T, 1)

        # Gather the label logit via a one-hot compare (no dynamic gather on TPU), from
        # `shifted` so the original logits vregs die right after the subtraction.
        # TODO(synk): if the bundle dump shows XLU saturation, move the two lane sums to the
        # idle MXU (matmul against a ones column) and defer the scalar reduce to the last i.
        class_ids = lax.broadcasted_iota(jnp.int32, (t, c), 1)
        label_shifted = jnp.sum(jnp.where(class_ids == labels, shifted, 0.0),
                                axis=-1, keepdims=True)                           # (T, 1)

        per_example = lse - label_shifted                  # (T, 1) == -log p(label)

        if needs_mask:
            # Rows past n (partial last block / re-read clamped blocks) hold unspecified
            # data -> per_example may be NaN/Inf there; the where() selects 0 for them.
            row_ids = lax.broadcasted_iota(jnp.int32, (t, 1), 0)
            global_row = (p * tiles_per_part + i) * tile_n + row_ids
            per_example = jnp.where(global_row < n_valid, per_example, 0.0)

        # Accumulate this tile's partial sum into the part's resident (8,128) block.
        out_ref[...] += jnp.sum(per_example)

    return kernel


def prediction_loss(click_probability, labels, weight=1.0, *, tile_n=None, num_parts=None):
    """weight * CrossEntropyLoss(click_probability, labels), mean reduction.

    `weight` is the module's scalar scale (NOT torch CE's per-class weight vector).
    """
    # TODO(synk): no ignore_index handling (torch default ignore_index=-100); labels are
    # assumed to be valid class indices, matching the reference module's usage.
    logits = click_probability                 # keep native dtype; cast inside the kernel
    n, c = logits.shape
    labels_col = labels.astype(jnp.int32).reshape(n, 1)
    # TODO(synk): labels ride as a lane-sparse (tile_n, 1) VMEM block (padded to 128 lanes);
    # a lane-dense (1, tile_n) layout would shrink that 16x but needs an in-kernel
    # lane->sublane relayout; footprint is accounted for in the tile budget instead.

    itemsize = jnp.dtype(logits.dtype).itemsize
    c_lanes = _round_up(c, 128)

    phys_vmem, dual_tc = _chip_info()
    vmem_cap = (36 << 20) if dual_tc else (80 << 20)

    # Per-row VMEM (everything lane-padded): double-buffered native-dtype logits blocks,
    # double-buffered (tile_n,1)->(tile_n,128) int32 label blocks, and ~6 f32 intermediates
    # (cast, shifted, exp, iota, compare, select) the compiler keeps live for the tile.
    per_row = 2 * c_lanes * itemsize + 2 * 128 * 4 + 6 * c_lanes * 4
    fixed = 2 * 8 * 128 * 4 + (2 << 20)                  # accumulator blocks + scratch slack

    budget_rows = max((vmem_cap - fixed) // per_row, 8)
    auto_tile = max(_round_down(min(budget_rows, 32768), 8), 8)

    if tile_n is None:
        tile_n = auto_tile
    else:
        # Never let an explicit tile exceed the VMEM budget -- shrink the tile, not the limit.
        tile_n = min(max(8, _round_down(int(tile_n), 8)), auto_tile)
    tile_n = min(tile_n, _round_up(n, 8))                # no point tiling past the batch

    num_tiles = int(pl.cdiv(n, tile_n))

    if num_parts is None:
        parts = 2 if (dual_tc and num_tiles >= 8) else 1
    else:
        parts = max(1, min(int(num_parts), num_tiles))
    tiles_per_part = int(pl.cdiv(num_tiles, parts))

    needs_mask = (parts * tiles_per_part * tile_n != n)

    vmem_est = per_row * tile_n + fixed
    vmem_limit = int(min(max(vmem_est, 16 << 20), phys_vmem - (8 << 20)))

    last_block = num_tiles - 1

    def block_idx(p, i):
        # Guard the (rare) fully out-of-range blocks when parts * tiles_per_part > num_tiles:
        # re-read the last valid block; its rows are zeroed by the global-row mask.
        return jnp.minimum(p * tiles_per_part + i, last_block)

    kernel = _make_ce_kernel(n, tile_n, tiles_per_part, needs_mask)

    partial = pl.pallas_call(
        kernel,
        out_shape=jax.ShapeDtypeStruct((parts, 8, 128), jnp.float32),
        grid=(parts, tiles_per_part),
        in_specs=[
            pl.BlockSpec((tile_n, c), lambda p, i: (block_idx(p, i), 0)),
            pl.BlockSpec((tile_n, 1), lambda p, i: (block_idx(p, i), 0)),
        ],
        out_specs=pl.BlockSpec((1, 8, 128), lambda p, i: (p, 0, 0)),
        compiler_params=pltpu.CompilerParams(
            dimension_semantics=("parallel", "arbitrary"),
            vmem_limit_bytes=vmem_limit,
        ),
    )(logits, labels_col)

    # Every element of part p's block holds that part's partial sum; combine + scale once.
    part_sums = partial[:, 0, 0]                       # (parts,)
    return (weight / n) * jnp.sum(part_sums)
    # TODO(synk): for C < 128, pack 128//C rows per lane row (segmented max/sum) to recover
    # the ~4x lane occupancy; for vocab-scale C, tile the class axis with an online
    # logsumexp accumulator sized against 64 MiB/TC on v7x.


def _reference(click_probability, labels, weight=1.0):
    # Pure-JAX reference of torch.nn.CrossEntropyLoss (mean reduction) scaled by weight.
    logp = jax.nn.log_softmax(click_probability.astype(jnp.float32), axis=-1)
    nll = -jnp.take_along_axis(logp, labels[:, None].astype(jnp.int32), axis=-1)[:, 0]
    return weight * jnp.mean(nll)


if __name__ == "__main__":
    key = jax.random.PRNGKey(0)
    k1, k2, k3, k4, k5, k6 = jax.random.split(key, 6)

    # Case 1: module-scale shapes (batch=8, classes=32), f32 logits, single exact tile.
    N1, C1 = 8, 32
    logits1 = jax.random.normal(k1, (N1, C1), dtype=jnp.float32)
    labels1 = jax.random.randint(k2, (N1,), 0, C1, dtype=jnp.int32)
    loss1 = jax.block_until_ready(prediction_loss(logits1, labels1, weight=1.0))
    ref1 = _reference(logits1, labels1, weight=1.0)
    assert jnp.allclose(loss1, ref1, rtol=1e-5, atol=1e-5), (loss1, ref1)

    # Case 2: bf16 logits, ragged batch, auto tile (single partial block, no host pad).
    N2, C2 = 300, 32
    logits2 = jax.random.normal(k3, (N2, C2), dtype=jnp.bfloat16)
    labels2 = jax.random.randint(k4, (N2,), 0, C2, dtype=jnp.int32)
    loss2 = jax.block_until_ready(prediction_loss(logits2, labels2, weight=2.5))
    ref2 = _reference(logits2, labels2, weight=2.5)
    assert jnp.allclose(loss2, ref2, rtol=1e-4, atol=1e-4), (loss2, ref2)

    # Case 3: multi-tile ragged grid with a forced 2-way partial-sum split (odd tile count
    # exercises the clamped out-of-range block + global-row mask path).
    N3, C3 = 1100, 128
    logits3 = jax.random.normal(k5, (N3, C3), dtype=jnp.float32)
    labels3 = jax.random.randint(k6, (N3,), 0, C3, dtype=jnp.int32)
    loss3 = jax.block_until_ready(
        prediction_loss(logits3, labels3, weight=0.5, tile_n=128, num_parts=2))
    ref3 = _reference(logits3, labels3, weight=0.5)
    assert jnp.allclose(loss3, ref3, rtol=1e-5, atol=1e-5), (loss3, ref3)

    print("KERNEL_OK")
</pallas_src>

<mosaic_0001>
module attributes {stable_mosaic.version = 11 : i64} {
  func.func @kernel(%arg0: i32, %arg1: i32, %arg2: memref<8x32xf32, #tpu.memory_space<vmem>>, %arg3: memref<8x1xi32, #tpu.memory_space<vmem>>, %arg4: memref<1x8x128xf32, #tpu.memory_space<vmem>>) attributes {dimension_semantics = [#tpu.dimension_semantics<parallel>, #tpu.dimension_semantics<arbitrary>], iteration_bounds = array<i64: 1, 1>, scalar_prefetch = 0 : i64, scratch_operands = 0 : i64, tpu.core_type = #tpu.core_type<tc>, window_params = [{transform_indices = @transform_0, window_bounds = array<i64: 8, 32>}, {transform_indices = @transform_1, window_bounds = array<i64: 8, 1>}, {transform_indices = @transform_2, window_bounds = array<i64: 1, 8, 128>}]} {
    %c0_i32 = arith.constant 0 : i32
    %0 = arith.cmpi eq, %arg1, %c0_i32 : i32
    %1 = arith.extui %0 : i1 to i32
    %c0_i32_0 = arith.constant 0 : i32
    %2 = arith.cmpi ne, %1, %c0_i32_0 : i32
    scf.if %2 {
      %cst_14 = arith.constant 0.000000e+00 : f32
      %29 = vector.broadcast %cst_14 : f32 to vector<1x8x128xf32>
      %c0_15 = arith.constant 0 : index
      %c0_16 = arith.constant 0 : index
      %c0_17 = arith.constant 0 : index
      %30 = vector.load %arg4[%c0_15, %c0_16, %c0_17] : memref<1x8x128xf32, #tpu.memory_space<vmem>>, vector<1x8x128xf32>
      tpu.vector_store %arg4[%c0_15, %c0_16, %c0_17], %29 {strides = array<i32>} : memref<1x8x128xf32, #tpu.memory_space<vmem>>, vector<1x8x128xf32>,
    } else {
    }
    %c0 = arith.constant 0 : index
    %c0_1 = arith.constant 0 : index
    %3 = vector.load %arg2[%c0, %c0_1] : memref<8x32xf32, #tpu.memory_space<vmem>>, vector<8x32xf32>
    %c0_2 = arith.constant 0 : index
    %c0_3 = arith.constant 0 : index
    %4 = vector.load %arg3[%c0_2, %c0_3] : memref<8x1xi32, #tpu.memory_space<vmem>>, vector<8x1xi32>
    %cst = arith.constant dense<0xFF800000> : vector<8xf32>
    %5 = vector.multi_reduction <maximumf>, %3, %cst [1] : vector<8x32xf32> to vector<8xf32>
    %6 = vector.shape_cast %5 : vector<8xf32> to vector<8x1xf32>
    %7 = vector.broadcast %6 : vector<8x1xf32> to vector<8x32xf32>
    %8 = arith.subf %3, %7 : vector<8x32xf32>
    %9 = math.exp %8 : vector<8x32xf32>
    %cst_4 = arith.constant dense<0.000000e+00> : vector<8xf32>
    %10 = vector.multi_reduction <add>, %9, %cst_4 [1] : vector<8x32xf32> to vector<8xf32>
    %11 = vector.shape_cast %10 : vector<8xf32> to vector<8x1xf32>
    %12 = math.log %11 : vector<8x1xf32>
    %13 = tpu.iota {dimensions = array<i32: 1>} : vector<8x32xi32>
    %14 = vector.broadcast %4 : vector<8x1xi32> to vector<8x32xi32>
    %15 = arith.cmpi eq, %13, %14 : vector<8x32xi32>
    %cst_5 = arith.constant 0.000000e+00 : f32
    %16 = vector.broadcast %cst_5 : f32 to vector<8x32xf32>
    %17 = arith.select %15, %8, %16 : vector<8x32xi1>, vector<8x32xf32>
    %cst_6 = arith.constant dense<0.000000e+00> : vector<8xf32>
    %18 = vector.multi_reduction <add>, %17, %cst_6 [1] : vector<8x32xf32> to vector<8xf32>
    %19 = vector.shape_cast %18 : vector<8xf32> to vector<8x1xf32>
    %20 = arith.subf %12, %19 : vector<8x1xf32>
    %c0_7 = arith.constant 0 : index
    %c0_8 = arith.constant 0 : index
    %c0_9 = arith.constant 0 : index
    %21 = vector.load %arg4[%c0_7, %c0_8, %c0_9] : memref<1x8x128xf32, #tpu.memory_space<vmem>>, vector<1x8x128xf32>
    %22 = vector.shape_cast %20 : vector<8x1xf32> to vector<1x8x1xf32>
    %cst_10 = arith.constant dense<0.000000e+00> : vector<1xf32>
    %23 = vector.multi_reduction <add>, %22, %cst_10 [1, 2] : vector<1x8x1xf32> to vector<1xf32>
    %24 = vector.shape_cast %23 : vector<1xf32> to vector<1x1x1xf32>
    %25 = vector.extract %24[0, 0, 0] : f32 from vector<1x1x1xf32>
    %26 = vector.broadcast %25 : f32 to vector<1x8x128xf32>
    %27 = arith.addf %21, %26 : vector<1x8x128xf32>
    %c0_11 = arith.constant 0 : index
    %c0_12 = arith.constant 0 : index
    %c0_13 = arith.constant 0 : index
    %28 = vector.load %arg4[%c0_11, %c0_12, %c0_13] : memref<1x8x128xf32, #tpu.memory_space<vmem>>, vector<1x8x128xf32>
    tpu.vector_store %arg4[%c0_11, %c0_12, %c0_13], %27 {strides = array<i32>} : memref<1x8x128xf32, #tpu.memory_space<vmem>>, vector<1x8x128xf32>,
    return
  }
  func.func @transform_0(%arg0: i32, %arg1: i32) -> (i32, i32) {
    %c1_i32 = arith.constant 1 : i32
    %0 = arith.muli %arg0, %c1_i32 : i32
    %1 = arith.addi %0, %arg1 : i32
    %c0_i32 = arith.constant 0 : i32
    %2 = arith.minsi %1, %c0_i32 : i32
    %c0_i32_0 = arith.constant 0 : i32
    %c0_i32_1 = arith.constant 0 : i32
    return %2, %c0_i32_0 : i32, i32
  }
  func.func @transform_1(%arg0: i32, %arg1: i32) -> (i32, i32) {
    %c1_i32 = arith.constant 1 : i32
    %0 = arith.muli %arg0, %c1_i32 : i32
    %1 = arith.addi %0, %arg1 : i32
    %c0_i32 = arith.constant 0 : i32
    %2 = arith.minsi %1, %c0_i32 : i32
    %c0_i32_0 = arith.constant 0 : i32
    %c0_i32_1 = arith.constant 0 : i32
    return %2, %c0_i32_0 : i32, i32
  }
  func.func @transform_2(%arg0: i32, %arg1: i32) -> (i32, i32, i32) {
    %c0_i32 = arith.constant 0 : i32
    %c0_i32_0 = arith.constant 0 : i32
    %c0_i32_1 = arith.constant 0 : i32
    return %arg0, %c0_i32, %c0_i32_0 : i32, i32, i32
  }
}

</mosaic_0001>

<llo_original>
// kernel: tpu_custom_call.1
$region0: #{tpu_custom_call.1}
  #allocation0 [shape = 'u32[]', space=smem, size = 0x4, offset = 0x4, fixed_abs, tag = 'smem constant byte address 0x4 - core index']
  #allocation1 [shape = 'u32[144,128]{1,0:T(1,128)}', space=vmem, size = 0x12000, scoped, tag = 'internal scratch']
  %s0 = inlined_call_operand.vmem [shape: f32[8,32], index: 0, kind: input, shape index: {}]
  %s1 = inlined_call_operand.vmem [shape: s32[8,1], index: 1, kind: input, shape index: {}]
  %s2 = inlined_call_operand.hbm [shape: f32[1,8,128], index: 2, kind: output, shape index: {}]
  %s3 = sld [smem:[#allocation0]]
  $region22: #{tpu_custom_call.1} parent=0
    _
  %s5 = ssub.s32 1, %s3
  %s6 = scalar_select 0, %s5, %s3
  $region1: #{tpu_custom_call.1} parent=0
    #allocation2 [shape = 'u8[4096]{0}', space=vmem, size = 0x1000, scoped, tag = 'output window, operand 0, single buffered']
    #allocation3 [shape = 's32[1]{0}', space=sflag, size = 0x4, scoped, tag = 'scoped memory for tpu_custom_call.1']
    %7 = vsyncpa [#allocation3], 0
    // Predicated region
    $region2: #{tpu_custom_call.1} parent=1 // pred_check
      _
    $region3: #{tpu_custom_call.1} parent=1 // pred_check_branch
      %9 = sbr.rel (0) target = $region5
    $region4: #{tpu_custom_call.1} parent=1 // pred_region
      %s10 = sadd.s32 0, 0
      %p11 = scmp.lt.s32.totalorder %s10, 0
      %s12 = scalar_select %p11, %s10, 0
      %p13 = scmp.lt.s32.totalorder %s12, 0
      %s14 = scalar_select %p13, %s12, 0
      %s15 = smul.addr %s14, 8
      %s16 = scalar_lea.vmem %s0, %s15
      %s17 = sadd.s32 0, 0
      %p18 = scmp.lt.s32.totalorder %s17, 0
      %s19 = scalar_select %p18, %s17, 0
    $region5: #{tpu_custom_call.1} parent=1 // pred_fallthru
      _
    // Predicated region
    $region6: #{tpu_custom_call.1} parent=1 // pred_check
      _
    $region7: #{tpu_custom_call.1} parent=1 // pred_check_branch
      %21 = sbr.rel (0) target = $region9
    $region8: #{tpu_custom_call.1} parent=1 // pred_region
      %s22 = sadd.s32 0, 0
      %p23 = scmp.lt.s32.totalorder %s22, 0
      %s24 = scalar_select %p23, %s22, 0
      %p25 = scmp.lt.s32.totalorder %s24, 0
      %s26 = scalar_select %p25, %s24, 0
      %s27 = smul.addr %s26, 8
      %s28 = scalar_lea.vmem %s1, %s27
      %s29 = sadd.s32 0, 0
      %p30 = scmp.lt.s32.totalorder %s29, 0
      %s31 = scalar_select %p30, %s29, 0
    $region9: #{tpu_custom_call.1} parent=1 // pred_fallthru
      _
    %s32 = sadd.s32 0, 0
    %p33 = scmp.lt.s32.totalorder %s32, 0
    %s34 = scalar_select %p33, %s32, 0
    %p35 = scmp.lt.s32.totalorder %s34, 0
    %s36 = scalar_select %p35, %s34, 0
    %s37 = smul.addr %s36, 8
    %s38 = scalar_lea.vmem %s0, %s37
    %s39 = sadd.s32 0, 0
    %p40 = scmp.lt.s32.totalorder %s39, 0
    %s41 = scalar_select %p40, %s39, 0
    %p42 = scmp.lt.s32.totalorder %s41, 0
    %s43 = scalar_select %p42, %s41, 0
    %s44 = smul.addr %s43, 8
    %s45 = scalar_lea.vmem %s1, %s44
    %s46 = sadd.s32 0, 0
    %p47 = scmp.lt.s32.totalorder %s46, 0
    %s48 = scalar_select %p47, %s46, 0
    %p49 = scmp.lt.s32.totalorder %s48, 0
    %s50 = scalar_select %p49, %s48, 0
    %s51 = smul.addr %s50, 8
    %s52 = scalar_lea.vmem %s0, %s51
    %s53 = sadd.s32 0, 0
    %p54 = scmp.lt.s32.totalorder %s53, 0
    %s55 = scalar_select %p54, %s53, 0
    %s56 = sadd.s32 0, 0
    %p57 = scmp.lt.s32.totalorder %s56, 0
    %s58 = scalar_select %p57, %s56, 0
    %p59 = scmp.lt.s32.totalorder %s58, 0
    %s60 = scalar_select %p59, %s58, 0
    %s61 = smul.addr %s60, 8
    %s62 = scalar_lea.vmem %s1, %s61
    %s63 = sadd.s32 0, 0
    %p64 = scmp.lt.s32.totalorder %s63, 0
    %s65 = scalar_select %p64, %s63, 0
    %p66 = scmp.eq.s32.totalorder 0, 0
    // Predicated region
    $region10: #{tpu_custom_call.1} parent=1 // pred_check
      %p67 = pneg %p66
    $region11: #{tpu_custom_call.1} parent=1 // pred_check_branch
      %69 = sbr.rel (%p67) target = $region13
    $region12: #{tpu_custom_call.1} parent=1 // pred_region
      %70 = vst [vmem:[#allocation2] sm:$0xff] 0.0
    $region13: #{tpu_custom_call.1} parent=1 // pred_fallthru
      _
    %v71 = vld [vmem:[%s52] sm:$0xff]
    %v72 = vld [vmem:[%s62] sm:$0xff]
    %vm73 = vcmask 261120
    %v74 = vsel %vm73, %v71, -inf
    %75 = vmax.xlane.f32.xlu0 %v74
    %v76 = vpop.xlane.xlu0 %75
    %v77 = vsub.f32 %v71, %v76
    %v78 = vmul.f32 %v77, 1.442695
    %v79 = vpow.pop %v78
    %v80 = vsel %vm73, %v79, 0.0
    %81 = vadd.xlane.f32.xlu0 %v80
    %v82 = vpop.xlane.xlu0 %81
    %v83 = vlog2.pop %v82
    %v84 = vmul.f32 %v83, 0.6931472
    %v85 = vlaneseq
    %v86 = vand.u32 %v85, 127
    %87 = vset.pattern.permute.xlu0 0
    %88 = vperm.xlu0 %87, %v72
    %v89 = vpop.permute.xlu0 %88
    %vm90 = vcmp.eq.s32.totalorder %v86, %v89
    %v91 = vsel %vm90, %v77, 0.0
    %v92 = vsel %vm73, %v91, 0.0
    %93 = vadd.xlane.f32.xlu0 %v92
    %v94 = vpop.xlane.xlu0 %93
    %v95 = vsub.f32 %v84, %v94
    %v96 = vld [vmem:[#allocation2] sm:$0xff]
    %vm97 = vcmask 7168
    %v98 = vsel %vm97, %v95, 0.0
    %99 = vadd.xlane.f32.xlu0 %v98
    %v100 = vpop.xlane.xlu0 %99
    %v101 = vrot.slane %v100, 4
    %v102 = vadd.f32 %v100, %v101
    %v103 = vrot.slane %v102, 2
    %v104 = vadd.f32 %v102, %v103
    %v105 = vrot.slane %v104, 1
    %v106 = vadd.f32 %v104, %v105
    %s107 = vtos %v106
    %v108 = vstv %s107
    %v109 = vadd.f32 %v96, %v108
    %110 = vst [vmem:[#allocation2] sm:$0xff] %v109
    // Predicated region
    $region14: #{tpu_custom_call.1} parent=1 // pred_check
      _
    $region15: #{tpu_custom_call.1} parent=1 // pred_check_branch
      %112 = sbr.rel (0) target = $region17
    $region16: #{tpu_custom_call.1} parent=1 // pred_region
      %s114 = ssub.s32 128, 128
      %115 = vsyncadd [#allocation3], %s114
      %s117 = sshll.u32 [#allocation2], 4
      %s118 = int_to_ptr.vmem [resolvable:$true] %s117
      %120 = dma.vmem_to_hbm [thread:$0]  %s118, 128, %s2, [#allocation3]
    $region17: #{tpu_custom_call.1} parent=1 // pred_fallthru
      _
    // Predicated region
    $region18: #{tpu_custom_call.1} parent=1 // pred_check
      _
    $region19: #{tpu_custom_call.1} parent=1 // pred_check_branch
      %122 = sbr.rel (0) target = $region21
    $region20: #{tpu_custom_call.1} parent=1 // pred_region
      %123 = dma.done [#allocation3], 128
    $region21: #{tpu_custom_call.1} parent=1 // pred_fallthru
      _
    %124 = vsyncpa [#allocation3], 1

</llo_original>
